<compile_context>
chip_gen: v6e
topology: v6e:2x2x1
jax: 0.10.0
libtpu: 0.0.40
codegen_flags: <defaults>
</compile_context>

<pallas_src>
import jax
import jax.numpy as jnp
from jax.experimental import pallas as pl
from jax.experimental.pallas import tpu as pltpu

TEMPERATURE = 0.07
DIAG_FILL = -10.0
INV_TEMP = 1.0 / TEMPERATURE
NEG_DIAG = DIAG_FILL * INV_TEMP      # masked-diagonal logit after /T


def _patch_nce_kernel(q_ref, k_ref, kpos_ref, loss_ref):
    # q_ref:    (Bt, TQ, Dp)  q row tile of Bt batch elements
    # k_ref:    (Bt, P,  Dp)  all patches of those batch elements
    # kpos_ref: (Bt, TQ, Dp)  the k rows matching this q tile (positives)
    # loss_ref: (Bt, 1, 1, TQ) lane-dense output slab
    bt = q_ref.shape[0]

    q = q_ref[...]
    k_all = k_ref[...]
    k_pos = kpos_ref[...]

    if q.dtype == jnp.float32:
        # Fold 1/T into q in f32: Bt*TQ*Dp multiplies instead of Bt*TQ*P.
        qs = q * INV_TEMP
        logits = jnp.einsum("bqd,bkd->bqk", qs, k_all,
                            preferred_element_type=jnp.float32)       # (Bt,TQ,P)
        l_pos = jnp.sum(qs * k_pos, axis=-1, keepdims=True)           # (Bt,TQ,1)
    else:
        # Sub-f32 MXU feed: keep the 1/T scale in f32 (post-matmul) so the
        # constant is never rounded to bf16; all softmax math stays f32.
        logits = jnp.einsum("bqd,bkd->bqk", q, k_all,
                            preferred_element_type=jnp.float32) * INV_TEMP
        l_pos = jnp.sum(q.astype(jnp.float32) * k_pos.astype(jnp.float32),
                        axis=-1, keepdims=True) * INV_TEMP

    # Mask-free logsumexp over concat([l_pos, masked negatives]) / T: the full
    # row sum already contains exp(diag - m) (the unmasked diagonal, which
    # stands in for the concatenated positive); the masked diagonal of the
    # actual logits contributes exp(-10/T - m).
    m = jnp.maximum(jnp.max(logits, axis=-1, keepdims=True), NEG_DIAG)  # (Bt,TQ,1)
    s = (jnp.sum(jnp.exp(logits - m), axis=-1, keepdims=True)
         + jnp.exp(NEG_DIAG - m))                                       # (Bt,TQ,1)
    loss = m + jnp.log(s) - l_pos                                       # (Bt,TQ,1)

    # Lane-dense stores: Bt tiny (TQ,1)->(1,TQ) transposes, each a single
    # unmasked row store, instead of TQ masked column stores.
    for t in range(bt):                       # static; Bt <= 8
        loss_ref[t, 0] = jnp.transpose(loss[t], (1, 0))                 # (1, TQ)


def _pick_row_tile(p):
    # 128-row tiles keep the resident (Bt, TQ, P) f32 logits slab small (v5e /
    # v7x VMEM) and are a full MXU tile on every generation; otherwise take all
    # P rows (block dim equal to the full array dim is always legal).
    return 128 if p % 128 == 0 else p


def _vmem_estimate(bt, p, dp, itemsize, tq):
    # Per-step residents: double-buffered pipelined blocks + f32 logits/exp temp.
    q_blk = bt * tq * dp * itemsize
    k_blk = bt * p * dp * itemsize
    kp_blk = bt * tq * dp * itemsize
    out_blk = bt * tq * 4
    logits = bt * tq * p * 4
    return 2 * (q_blk + k_blk + kp_blk + out_blk) + 2 * logits


def _pick_batch_tile(b, p, dp, itemsize, tq):
    # Largest divisor of b (capped at 8) whose per-step working set fits a
    # conservative budget that also holds on v7x (64 MiB physical VMEM).
    budget = 24 * 1024 * 1024
    best = 1
    for d in range(1, min(b, 8) + 1):
        if b % d == 0 and (d == 1 or _vmem_estimate(d, p, dp, itemsize, tq) <= budget):
            best = d
    return best


def patch_nce_loss(feat_q, feat_k, batch_size, *, matmul_dtype=None):
    """feat_q, feat_k: (num_patches, dim). Returns loss of shape (num_patches,)."""
    num_patches, dim = feat_q.shape
    assert num_patches % batch_size == 0
    p = num_patches // batch_size

    # Optional reduced-precision MXU feed (v6e/v7x: f32 operands cost ~3x on
    # the MXU and double HBM/VMEM traffic). Softmax math always stays in f32.
    if matmul_dtype is not None:
        feat_q = feat_q.astype(matmul_dtype)
        feat_k = feat_k.astype(matmul_dtype)

    # Zero-pad the feature dim to a multiple of 128 so q/k DMAs and vregs are
    # lane-dense; zero padding does not change any dot product.
    dp = ((dim + 127) // 128) * 128
    if dp != dim:
        feat_q = jnp.pad(feat_q, ((0, 0), (0, dp - dim)))
        feat_k = jnp.pad(feat_k, ((0, 0), (0, dp - dim)))

    q = feat_q.reshape(batch_size, p, dp)
    k = feat_k.reshape(batch_size, p, dp)
    itemsize = q.dtype.itemsize

    tq = _pick_row_tile(p)
    nq = p // tq
    bt = _pick_batch_tile(batch_size, p, dp, itemsize, tq)
    nb = batch_size // bt

    # k's block index only changes with the batch-tile axis; when it dominates
    # VMEM and inner steps exist to hide the refetch, drop its pipeline depth
    # to 1 (halves the largest VMEM resident — matters on v7x's 64 MiB).
    if nq >= 2 and bt * p * dp * itemsize > (8 << 20):
        k_spec = pl.BlockSpec((bt, p, dp), lambda bb, i: (bb, 0, 0),
                              pipeline_mode=pl.Buffered(1))
    else:
        k_spec = pl.BlockSpec((bt, p, dp), lambda bb, i: (bb, 0, 0))

    est = _vmem_estimate(bt, p, dp, itemsize, tq)
    vmem_limit = int(min(100 * 1024 * 1024, max(32 * 1024 * 1024, 2 * est)))

    out = pl.pallas_call(
        _patch_nce_kernel,
        out_shape=jax.ShapeDtypeStruct((batch_size, nq, 1, tq), jnp.float32),
        grid_spec=pltpu.PrefetchScalarGridSpec(
            num_scalar_prefetch=0,
            grid=(nb, nq),   # batch-tile outer, rows inner: k fetched once per batch tile
            in_specs=[
                pl.BlockSpec((bt, tq, dp), lambda bb, i: (bb, i, 0)),   # q tile
                k_spec,                                                  # all k of batch tile
                pl.BlockSpec((bt, tq, dp), lambda bb, i: (bb, i, 0)),   # matching k (positives)
            ],
            out_specs=pl.BlockSpec((bt, 1, 1, tq), lambda bb, i: (bb, i, 0, 0)),
        ),
        compiler_params=pltpu.CompilerParams(
            dimension_semantics=("parallel", "parallel"),
            vmem_limit_bytes=vmem_limit,
        ),
    )(q, k, k)

    # (B, nq, 1, tq) flattens batch-major, row-major within each batch element,
    # matching the PyTorch (num_patches,) ordering.
    return out.reshape(num_patches)


def _reference(feat_q, feat_k, batch_size):
    # Pure-JAX reference mirroring the PyTorch forward.
    num_patches, dim = feat_q.shape
    p = num_patches // batch_size
    l_pos = jnp.sum(feat_q * feat_k, axis=1, keepdims=True)          # (N, 1)
    q = feat_q.reshape(batch_size, p, dim)
    k = feat_k.reshape(batch_size, p, dim)
    l_neg = jnp.einsum("bpd,bqd->bpq", q, k)                         # (B, P, P)
    eye = jnp.eye(p, dtype=bool)[None]
    l_neg = jnp.where(eye, DIAG_FILL, l_neg).reshape(-1, p)          # (N, P)
    out = jnp.concatenate([l_pos, l_neg], axis=1) / TEMPERATURE      # (N, 1+P)
    return jax.nn.logsumexp(out, axis=1) - out[:, 0]


if __name__ == "__main__":
    batch_size = 2
    patches_per_image = 16
    dim = 32
    num_patches = batch_size * patches_per_image

    key = jax.random.PRNGKey(0)
    kq, kk = jax.random.split(key)
    feat_q = jax.random.normal(kq, (num_patches, dim), dtype=jnp.float32)
    feat_k = jax.random.normal(kk, (num_patches, dim), dtype=jnp.float32)

    loss = patch_nce_loss(feat_q, feat_k, batch_size)
    loss = jax.block_until_ready(loss)

    ref = _reference(feat_q, feat_k, batch_size)
    assert loss.shape == (num_patches,)
    assert jnp.allclose(loss, ref, atol=1e-3, rtol=1e-3), (
        "max abs diff = %f" % float(jnp.max(jnp.abs(loss - ref))))

    # Exercise the reduced-precision MXU path (v6e/v7x optimization). The bound
    # is loose on purpose: bf16 operands genuinely perturb the logits by ~0.3%.
    loss_bf16 = patch_nce_loss(feat_q, feat_k, batch_size,
                               matmul_dtype=jnp.bfloat16)
    loss_bf16 = jax.block_until_ready(loss_bf16)
    assert bool(jnp.all(jnp.isfinite(loss_bf16)))
    assert float(jnp.max(jnp.abs(loss_bf16 - ref))) < 3.0

    print("KERNEL_OK")
</pallas_src>

<mosaic_0001>
module attributes {stable_mosaic.version = 11 : i64} {
  func.func @_patch_nce_kernel(%arg0: i32, %arg1: i32, %arg2: memref<2x16x128xf32, #tpu.memory_space<vmem>>, %arg3: memref<2x16x128xf32, #tpu.memory_space<vmem>>, %arg4: memref<2x16x128xf32, #tpu.memory_space<vmem>>, %arg5: memref<2x1x1x16xf32, #tpu.memory_space<vmem>>) attributes {dimension_semantics = [#tpu.dimension_semantics<parallel>, #tpu.dimension_semantics<parallel>], iteration_bounds = array<i64: 1, 1>, scalar_prefetch = 0 : i64, scratch_operands = 0 : i64, tpu.core_type = #tpu.core_type<tc>, window_params = [{transform_indices = @transform_0, window_bounds = array<i64: 2, 16, 128>}, {transform_indices = @transform_1, window_bounds = array<i64: 2, 16, 128>}, {transform_indices = @transform_2, window_bounds = array<i64: 2, 16, 128>}, {transform_indices = @transform_3, window_bounds = array<i64: 2, 1, 1, 16>}]} {
    %c0 = arith.constant 0 : index
    %c0_0 = arith.constant 0 : index
    %c0_1 = arith.constant 0 : index
    %0 = vector.load %arg2[%c0, %c0_0, %c0_1] : memref<2x16x128xf32, #tpu.memory_space<vmem>>, vector<2x16x128xf32>
    %c0_2 = arith.constant 0 : index
    %c0_3 = arith.constant 0 : index
    %c0_4 = arith.constant 0 : index
    %1 = vector.load %arg3[%c0_2, %c0_3, %c0_4] : memref<2x16x128xf32, #tpu.memory_space<vmem>>, vector<2x16x128xf32>
    %c0_5 = arith.constant 0 : index
    %c0_6 = arith.constant 0 : index
    %c0_7 = arith.constant 0 : index
    %2 = vector.load %arg4[%c0_5, %c0_6, %c0_7] : memref<2x16x128xf32, #tpu.memory_space<vmem>>, vector<2x16x128xf32>
    %cst = arith.constant 14.2857141 : f32
    %3 = vector.broadcast %cst : f32 to vector<2x16x128xf32>
    %4 = arith.mulf %0, %3 : vector<2x16x128xf32>
    "tpu.trace_start"() <{level = 10 : i32, message = "bqd,bkd->bqk"}> : () -> ()
    %cst_8 = arith.constant dense<0.000000e+00> : vector<2x16x16xf32>
    %5 = tpu.matmul %4, %1, %cst_8 {dimension_numbers = #tpu.dot_dimension_numbers<[2], [2], [1], [1], [0, 0, 0, 1, 1, 1], [0], [0]>} : vector<2x16x128xf32>, vector<2x16x128xf32>, vector<2x16x16xf32> -> vector<2x16x16xf32>
    "tpu.trace_stop"() : () -> ()
    %6 = arith.mulf %4, %2 : vector<2x16x128xf32>
    %cst_9 = arith.constant dense<0.000000e+00> : vector<2x16xf32>
    %7 = vector.multi_reduction <add>, %6, %cst_9 [2] : vector<2x16x128xf32> to vector<2x16xf32>
    %8 = vector.shape_cast %7 : vector<2x16xf32> to vector<2x16x1xf32>
    %cst_10 = arith.constant dense<0xFF800000> : vector<2x16xf32>
    %9 = vector.multi_reduction <maximumf>, %5, %cst_10 [2] : vector<2x16x16xf32> to vector<2x16xf32>
    %10 = vector.shape_cast %9 : vector<2x16xf32> to vector<2x16x1xf32>
    %cst_11 = arith.constant -142.857147 : f32
    %11 = vector.broadcast %cst_11 : f32 to vector<2x16x1xf32>
    %12 = arith.maximumf %10, %11 : vector<2x16x1xf32>
    %13 = vector.broadcast %12 : vector<2x16x1xf32> to vector<2x16x16xf32>
    %14 = arith.subf %5, %13 : vector<2x16x16xf32>
    %15 = math.exp %14 : vector<2x16x16xf32>
    %cst_12 = arith.constant dense<0.000000e+00> : vector<2x16xf32>
    %16 = vector.multi_reduction <add>, %15, %cst_12 [2] : vector<2x16x16xf32> to vector<2x16xf32>
    %17 = vector.shape_cast %16 : vector<2x16xf32> to vector<2x16x1xf32>
    %cst_13 = arith.constant -142.857147 : f32
    %18 = vector.broadcast %cst_13 : f32 to vector<2x16x1xf32>
    %19 = arith.subf %18, %12 : vector<2x16x1xf32>
    %20 = math.exp %19 : vector<2x16x1xf32>
    %21 = arith.addf %17, %20 : vector<2x16x1xf32>
    %22 = math.log %21 : vector<2x16x1xf32>
    %23 = arith.addf %12, %22 : vector<2x16x1xf32>
    %24 = arith.subf %23, %8 : vector<2x16x1xf32>
    %25 = vector.extract_strided_slice %24 {offsets = [0, 0, 0], sizes = [1, 16, 1], strides = [1, 1, 1]} : vector<2x16x1xf32> to vector<1x16x1xf32>
    %26 = vector.shape_cast %25 : vector<1x16x1xf32> to vector<16x1xf32>
    %27 = tpu.transpose %26, [1, 0] : vector<16x1xf32> -> vector<1x16xf32>
    %c0_14 = arith.constant 0 : index
    %c0_15 = arith.constant 0 : index
    %c0_16 = arith.constant 0 : index
    %c0_17 = arith.constant 0 : index
    %28 = vector.load %arg5[%c0_14, %c0_15, %c0_16, %c0_17] : memref<2x1x1x16xf32, #tpu.memory_space<vmem>>, vector<1x1x1x16xf32>
    %29 = vector.shape_cast %28 : vector<1x1x1x16xf32> to vector<1x16xf32>
    %30 = vector.shape_cast %27 : vector<1x16xf32> to vector<1x1x1x16xf32>
    tpu.vector_store %arg5[%c0_14, %c0_15, %c0_16, %c0_17], %30 {strides = array<i32>} : memref<2x1x1x16xf32, #tpu.memory_space<vmem>>, vector<1x1x1x16xf32>,
    %31 = vector.extract_strided_slice %24 {offsets = [1, 0, 0], sizes = [1, 16, 1], strides = [1, 1, 1]} : vector<2x16x1xf32> to vector<1x16x1xf32>
    %32 = vector.shape_cast %31 : vector<1x16x1xf32> to vector<16x1xf32>
    %33 = tpu.transpose %32, [1, 0] : vector<16x1xf32> -> vector<1x16xf32>
    %c1 = arith.constant 1 : index
    %c0_18 = arith.constant 0 : index
    %c0_19 = arith.constant 0 : index
    %c0_20 = arith.constant 0 : index
    %34 = vector.load %arg5[%c1, %c0_18, %c0_19, %c0_20] : memref<2x1x1x16xf32, #tpu.memory_space<vmem>>, vector<1x1x1x16xf32>
    %35 = vector.shape_cast %34 : vector<1x1x1x16xf32> to vector<1x16xf32>
    %36 = vector.shape_cast %33 : vector<1x16xf32> to vector<1x1x1x16xf32>
    tpu.vector_store %arg5[%c1, %c0_18, %c0_19, %c0_20], %36 {strides = array<i32>} : memref<2x1x1x16xf32, #tpu.memory_space<vmem>>, vector<1x1x1x16xf32>,
    return
  }
  func.func @transform_0(%arg0: i32, %arg1: i32) -> (i32, i32, i32) {
    %c0_i32 = arith.constant 0 : i32
    %c0_i32_0 = arith.constant 0 : i32
    return %arg0, %arg1, %c0_i32 : i32, i32, i32
  }
  func.func @transform_1(%arg0: i32, %arg1: i32) -> (i32, i32, i32) {
    %c0_i32 = arith.constant 0 : i32
    %c0_i32_0 = arith.constant 0 : i32
    %c0_i32_1 = arith.constant 0 : i32
    return %arg0, %c0_i32, %c0_i32_0 : i32, i32, i32
  }
  func.func @transform_2(%arg0: i32, %arg1: i32) -> (i32, i32, i32) {
    %c0_i32 = arith.constant 0 : i32
    %c0_i32_0 = arith.constant 0 : i32
    return %arg0, %arg1, %c0_i32 : i32, i32, i32
  }
  func.func @transform_3(%arg0: i32, %arg1: i32) -> (i32, i32, i32, i32) {
    %c0_i32 = arith.constant 0 : i32
    %c0_i32_0 = arith.constant 0 : i32
    %c0_i32_1 = arith.constant 0 : i32
    return %arg0, %arg1, %c0_i32, %c0_i32_0 : i32, i32, i32, i32
  }
}

</mosaic_0001>

<llo_original>
// kernel: tpu_custom_call.1
$region0: #{tpu_custom_call.1}
  #allocation0 [shape = 'u32[]', space=smem, size = 0x4, offset = 0x4, fixed_abs, tag = 'smem constant byte address 0x4 - core index']
  #allocation1 [shape = 'u32[144,128]{1,0:T(1,128)}', space=vmem, size = 0x12000, scoped, tag = 'internal scratch']
  %s0 = inlined_call_operand.hbm [shape: f32[2,16,128], index: 0, kind: input, shape index: {}]
  %s1 = inlined_call_operand.hbm [shape: f32[2,16,128], index: 1, kind: input, shape index: {}]
  %s2 = inlined_call_operand.hbm [shape: f32[2,16,128], index: 2, kind: input, shape index: {}]
  %s3 = inlined_call_operand.hbm [shape: f32[2,1,1,16], index: 3, kind: output, shape index: {}]
  %s4 = sld [smem:[#allocation0]]
  $region34: #{tpu_custom_call.1} parent=0
    _
  %s6 = ssub.s32 1, %s4
  %s7 = scalar_select 0, %s6, %s4
  $region1: #{tpu_custom_call.1} parent=0
    #allocation2 [shape = 'u8[16384]{0}', space=vmem, size = 0x4000, scoped, tag = 'input window, operand 0, single buffered']
    #allocation3 [shape = 's32[1]{0}', space=sflag, size = 0x4, scoped, tag = 'scoped memory for tpu_custom_call.1']
    #allocation4 [shape = 's32[1]{0}', space=sflag, size = 0x4, scoped, tag = 'scoped memory for tpu_custom_call.1']
    #allocation5 [shape = 'u8[16384]{0}', space=vmem, size = 0x4000, scoped, tag = 'input window, operand 1, single buffered']
    #allocation6 [shape = 's32[1]{0}', space=sflag, size = 0x4, scoped, tag = 'scoped memory for tpu_custom_call.1']
    #allocation7 [shape = 'u8[16384]{0}', space=vmem, size = 0x4000, scoped, tag = 'input window, operand 2, single buffered']
    #allocation8 [shape = 'u8[1024]{0}', space=vmem, size = 0x400, scoped, tag = 'output window, operand 0, single buffered']
    %8 = vsyncpa [#allocation3], 0
    %9 = vsyncpa [#allocation6], 0
    %10 = vsyncpa [#allocation4], 0
    // Predicated region
    $region2: #{tpu_custom_call.1} parent=1 // pred_check
      _
    $region3: #{tpu_custom_call.1} parent=1 // pred_check_branch
      %12 = sbr.rel (0) target = $region5
    $region4: #{tpu_custom_call.1} parent=1 // pred_region
      %s14 = ssub.s32 512, 512
      %15 = vsyncadd [#allocation3], %s14
      %s16 = sshll.u32 [#allocation2], 4
      %s17 = int_to_ptr.vmem [resolvable:$true] %s16
      %22 = dma.hbm_to_vmem [thread:$0]  %s0, 512, %s17, [#allocation3], 128, 128, 8
    $region5: #{tpu_custom_call.1} parent=1 // pred_fallthru
      _
    // Predicated region
    $region6: #{tpu_custom_call.1} parent=1 // pred_check
      _
    $region7: #{tpu_custom_call.1} parent=1 // pred_check_branch
      %24 = sbr.rel (0) target = $region9
    $region8: #{tpu_custom_call.1} parent=1 // pred_region
      %s26 = ssub.s32 512, 512
      %27 = vsyncadd [#allocation6], %s26
      %s28 = sshll.u32 [#allocation5], 4
      %s29 = int_to_ptr.vmem [resolvable:$true] %s28
      %34 = dma.hbm_to_vmem [thread:$0]  %s1, 512, %s29, [#allocation6], 128, 128, 8
    $region9: #{tpu_custom_call.1} parent=1 // pred_fallthru
      _
    // Predicated region
    $region10: #{tpu_custom_call.1} parent=1 // pred_check
      _
    $region11: #{tpu_custom_call.1} parent=1 // pred_check_branch
      %36 = sbr.rel (0) target = $region13
    $region12: #{tpu_custom_call.1} parent=1 // pred_region
      %s38 = ssub.s32 512, 512
      %39 = vsyncadd [#allocation6], %s38
      %s40 = sshll.u32 [#allocation7], 4
      %s41 = int_to_ptr.vmem [resolvable:$true] %s40
      %46 = dma.hbm_to_vmem [thread:$0]  %s2, 512, %s41, [#allocation6], 128, 128, 8
    $region13: #{tpu_custom_call.1} parent=1 // pred_fallthru
      _
    // Predicated region
    $region14: #{tpu_custom_call.1} parent=1 // pred_check
      _
    $region15: #{tpu_custom_call.1} parent=1 // pred_check_branch
      %48 = sbr.rel (0) target = $region17
    $region16: #{tpu_custom_call.1} parent=1 // pred_region
      %49 = dma.done [#allocation3], 512
    $region17: #{tpu_custom_call.1} parent=1 // pred_fallthru
      _
    // Predicated region
    $region18: #{tpu_custom_call.1} parent=1 // pred_check
      _
    $region19: #{tpu_custom_call.1} parent=1 // pred_check_branch
      %51 = sbr.rel (0) target = $region21
    $region20: #{tpu_custom_call.1} parent=1 // pred_region
      %52 = dma.done [#allocation6], 512
    $region21: #{tpu_custom_call.1} parent=1 // pred_fallthru
      _
    // Predicated region
    $region22: #{tpu_custom_call.1} parent=1 // pred_check
      _
    $region23: #{tpu_custom_call.1} parent=1 // pred_check_branch
      %54 = sbr.rel (0) target = $region25
    $region24: #{tpu_custom_call.1} parent=1 // pred_region
      %55 = dma.done [#allocation6], 512
    $region25: #{tpu_custom_call.1} parent=1 // pred_fallthru
      _
    %v56 = vld [vmem:[#allocation2] sm:$0xff]
    %v57 = vld [vmem:[#allocation2 + $0x8] sm:$0xff]
    %v58 = vld [vmem:[#allocation2 + $0x10] sm:$0xff]
    %v59 = vld [vmem:[#allocation2 + $0x18] sm:$0xff]
    %v60 = vld [vmem:[#allocation5] sm:$0xff]
    %v61 = vld [vmem:[#allocation5 + $0x8] sm:$0xff]
    %v62 = vld [vmem:[#allocation5 + $0x10] sm:$0xff]
    %v63 = vld [vmem:[#allocation5 + $0x18] sm:$0xff]
    %v64 = vld [vmem:[#allocation7] sm:$0xff]
    %v65 = vld [vmem:[#allocation7 + $0x8] sm:$0xff]
    %v66 = vld [vmem:[#allocation7 + $0x10] sm:$0xff]
    %v67 = vld [vmem:[#allocation7 + $0x18] sm:$0xff]
    %v68 = vmul.f32 %v56, 14.285714
    %v69 = vmul.f32 %v57, 14.285714
    %v70 = vmul.f32 %v58, 14.285714
    %v71 = vmul.f32 %v59, 14.285714
    %72 = vmatprep.subr.mxu0 0.0
    %73 = vmatpush1.xpose.msra.mxu0 0.0
    %74 = vmatprep.subr.mxu0 0.0
    %75 = vmatpush1.xpose.msra.mxu0 0.0
    %76 = vmatprep.subr.mxu0 0.0
    %77 = vmatpush1.xpose.msra.mxu0 0.0
    %78 = vmatprep.subr.mxu0 0.0
    %79 = vmatpush1.xpose.msra.mxu0 0.0
    %80 = vmatprep.subr.mxu0 0.0
    %81 = vmatpush1.xpose.msra.mxu0 0.0
    %82 = vmatprep.subr.mxu0 0.0
    %83 = vmatpush1.xpose.msra.mxu0 0.0
    %84 = vmatprep.subr.mxu0 0.0
    %85 = vmatpush1.xpose.msra.mxu0 0.0
    %86 = vmatprep.subr.mxu0 0.0
    %87 = vmatpush1.xpose.msra.mxu0 0.0
    %88 = vmatprep.subr.mxu0 0.0
    %89 = vmatpush1.xpose.msra.mxu0 0.0
    %90 = vmatprep.subr.mxu0 0.0
    %91 = vmatpush1.xpose.msra.mxu0 0.0
    %92 = vmatprep.subr.mxu0 0.0
    %93 = vmatpush1.xpose.msra.mxu0 0.0
    %94 = vmatprep.subr.mxu0 0.0
    %95 = vmatpush1.xpose.msra.mxu0 0.0
    %96 = vmatprep.subr.mxu0 0.0
    %97 = vmatpush1.xpose.msra.mxu0 0.0
    %98 = vmatprep.subr.mxu0 0.0
    %99 = vmatpush1.xpose.msra.mxu0 0.0
    %100 = vmatprep.subr.mxu0 0.0
    %101 = vmatpush1.xpose.msra.mxu0 %v61
    %102 = vmatprep.subr.mxu0 0.0
    %103 = vmatpush1.xpose.msra.mxu0 %v60
    %104 = vmatprep.subr.mxu0 0.0
    %105 = vmatpush2.xpose.msra.mxu0 0.0
    %106 = vmatprep.subr.mxu0 0.0
    %107 = vmatpush2.xpose.msra.mxu0 0.0
    %108 = vmatprep.subr.mxu0 0.0
    %109 = vmatpush2.xpose.msra.mxu0 0.0
    %110 = vmatprep.subr.mxu0 0.0
    %111 = vmatpush2.xpose.msra.mxu0 0.0
    %112 = vmatprep.subr.mxu0 0.0
    %113 = vmatpush2.xpose.msra.mxu0 0.0
    %114 = vmatprep.subr.mxu0 0.0
    %115 = vmatpush2.xpose.msra.mxu0 0.0
    %116 = vmatprep.subr.mxu0 0.0
    %117 = vmatpush2.xpose.msra.mxu0 0.0
    %118 = vmatprep.subr.mxu0 0.0
    %119 = vmatpush2.xpose.msra.mxu0 0.0
    %120 = vmatprep.subr.mxu0 0.0
    %121 = vmatpush2.xpose.msra.mxu0 0.0
    %122 = vmatprep.subr.mxu0 0.0
    %123 = vmatpush2.xpose.msra.mxu0 0.0
    %124 = vmatprep.subr.mxu0 0.0
    %125 = vmatpush2.xpose.msra.mxu0 0.0
    %126 = vmatprep.subr.mxu0 0.0
    %127 = vmatpush2.xpose.msra.mxu0 0.0
    %128 = vmatprep.subr.mxu0 0.0
    %129 = vmatpush2.xpose.msra.mxu0 0.0
    %130 = vmatprep.subr.mxu0 0.0
    %131 = vmatpush2.xpose.msra.mxu0 0.0
    %132 = vmatprep.subr.mxu0 0.0
    %133 = vmatpush2.xpose.msra.mxu0 0.0
    %134 = vmatprep.subr.mxu0 0.0
    %135 = vmatpush2.xpose.msra.mxu0 0.0
    %136 = vmatprep.mubr.f32.mxu0 0.0
    %137 = vmatmul.mubr.f32.gmra.mxu0 %v68
    %v138 = vpop.f32.mrf.mxu0
    %v139 = vadd.f32 0.0, %v138
    %v140 = vpop.f32.mrf.mxu0
    %141 = vmatprep.mubr.f32.mxu0 0.0
    %142 = vmatmul.mubr.f32.gmra.mxu0 %v69
    %v143 = vpop.f32.mrf.mxu0
    %v144 = vadd.f32 0.0, %v143
    %v145 = vpop.f32.mrf.mxu0
    %146 = vdwg.mxu0
    %147 = vmatprep.subr.mxu0 0.0
    %148 = vmatpush1.xpose.msra.mxu0 0.0
    %149 = vmatprep.subr.mxu0 0.0
    %150 = vmatpush1.xpose.msra.mxu0 0.0
    %151 = vmatprep.subr.mxu0 0.0
    %152 = vmatpush1.xpose.msra.mxu0 0.0
    %153 = vmatprep.subr.mxu0 0.0
    %154 = vmatpush1.xpose.msra.mxu0 0.0
    %155 = vmatprep.subr.mxu0 0.0
    %156 = vmatpush1.xpose.msra.mxu0 0.0
    %157 = vmatprep.subr.mxu0 0.0
    %158 = vmatpush1.xpose.msra.mxu0 0.0
    %159 = vmatprep.subr.mxu0 0.0
    %160 = vmatpush1.xpose.msra.mxu0 0.0
    %161 = vmatprep.subr.mxu0 0.0
    %162 = vmatpush1.xpose.msra.mxu0 0.0
    %163 = vmatprep.subr.mxu0 0.0
    %164 = vmatpush1.xpose.msra.mxu0 0.0
    %165 = vmatprep.subr.mxu0 0.0
    %166 = vmatpush1.xpose.msra.mxu0 0.0
    %167 = vmatprep.subr.mxu0 0.0
    %168 = vmatpush1.xpose.msra.mxu0 0.0
    %169 = vmatprep.subr.mxu0 0.0
    %170 = vmatpush1.xpose.msra.mxu0 0.0
    %171 = vmatprep.subr.mxu0 0.0
    %172 = vmatpush1.xpose.msra.mxu0 0.0
    %173 = vmatprep.subr.mxu0 0.0
    %174 = vmatpush1.xpose.msra.mxu0 0.0
    %175 = vmatprep.subr.mxu0 0.0
    %176 = vmatpush1.xpose.msra.mxu0 %v63
    %177 = vmatprep.subr.mxu0 0.0
    %178 = vmatpush1.xpose.msra.mxu0 %v62
    %179 = vmatprep.subr.mxu0 0.0
    %180 = vmatpush2.xpose.msra.mxu0 0.0
    %181 = vmatprep.subr.mxu0 0.0
    %182 = vmatpush2.xpose.msra.mxu0 0.0
    %183 = vmatprep.subr.mxu0 0.0
    %184 = vmatpush2.xpose.msra.mxu0 0.0
    %185 = vmatprep.subr.mxu0 0.0
    %186 = vmatpush2.xpose.msra.mxu0 0.0
    %187 = vmatprep.subr.mxu0 0.0
    %188 = vmatpush2.xpose.msra.mxu0 0.0
    %189 = vmatprep.subr.mxu0 0.0
    %190 = vmatpush2.xpose.msra.mxu0 0.0
    %191 = vmatprep.subr.mxu0 0.0
    %192 = vmatpush2.xpose.msra.mxu0 0.0
    %193 = vmatprep.subr.mxu0 0.0
    %194 = vmatpush2.xpose.msra.mxu0 0.0
    %195 = vmatprep.subr.mxu0 0.0
    %196 = vmatpush2.xpose.msra.mxu0 0.0
    %197 = vmatprep.subr.mxu0 0.0
    %198 = vmatpush2.xpose.msra.mxu0 0.0
    %199 = vmatprep.subr.mxu0 0.0
    %200 = vmatpush2.xpose.msra.mxu0 0.0
    %201 = vmatprep.subr.mxu0 0.0
    %202 = vmatpush2.xpose.msra.mxu0 0.0
    %203 = vmatprep.subr.mxu0 0.0
    %204 = vmatpush2.xpose.msra.mxu0 0.0
    %205 = vmatprep.subr.mxu0 0.0
    %206 = vmatpush2.xpose.msra.mxu0 0.0
    %207 = vmatprep.subr.mxu0 0.0
    %208 = vmatpush2.xpose.msra.mxu0 0.0
    %209 = vmatprep.subr.mxu0 0.0
    %210 = vmatpush2.xpose.msra.mxu0 0.0
    %211 = vmatprep.mubr.f32.mxu0 0.0
    %212 = vmatmul.mubr.f32.gmra.mxu0 %v70
    %v213 = vpop.f32.mrf.mxu0
    %v214 = vadd.f32 0.0, %v213
    %v215 = vpop.f32.mrf.mxu0
    %216 = vmatprep.mubr.f32.mxu0 0.0
    %217 = vmatmul.mubr.f32.gmra.mxu0 %v71
    %v218 = vpop.f32.mrf.mxu0
    %v219 = vadd.f32 0.0, %v218
    %v220 = vpop.f32.mrf.mxu0
    %221 = vdwg.mxu0
    %v222 = vmul.f32 %v68, %v64
    %v223 = vmul.f32 %v69, %v65
    %v224 = vmul.f32 %v70, %v66
    %v225 = vmul.f32 %v71, %v67
    %226 = vadd.xlane.f32.xlu0 %v222
    %v227 = vpop.xlane.xlu0 %226
    %228 = vadd.xlane.f32.xlu0 %v223
    %v229 = vpop.xlane.xlu0 %228
    %230 = vadd.xlane.f32.xlu0 %v224
    %v231 = vpop.xlane.xlu0 %230
    %232 = vadd.xlane.f32.xlu0 %v225
    %v233 = vpop.xlane.xlu0 %232
    %vm234 = vcmask 130048
    %v235 = vsel %vm234, %v139, -inf
    %236 = vmax.xlane.f32.xlu0 %v235
    %v237 = vpop.xlane.xlu0 %236
    %v238 = vsel %vm234, %v144, -inf
    %239 = vmax.xlane.f32.xlu0 %v238
    %v240 = vpop.xlane.xlu0 %239
    %v241 = vsel %vm234, %v214, -inf
    %242 = vmax.xlane.f32.xlu0 %v241
    %v243 = vpop.xlane.xlu0 %242
    %v244 = vsel %vm234, %v219, -inf
    %245 = vmax.xlane.f32.xlu0 %v244
    %v246 = vpop.xlane.xlu0 %245
    %v247 = vmax.f32 %v237, -142.85715
    %v248 = vmax.f32 %v240, -142.85715
    %v249 = vmax.f32 %v243, -142.85715
    %v250 = vmax.f32 %v246, -142.85715
    %v251 = vsub.f32 %v139, %v247
    %v252 = vsub.f32 %v144, %v248
    %v253 = vsub.f32 %v214, %v249
    %v254 = vsub.f32 %v219, %v250
    %v255 = vmul.f32 %v251, 1.442695
    %v256 = vpow.pop %v255
    %v257 = vmul.f32 %v252, 1.442695
    %v258 = vpow.pop %v257
    %v259 = vmul.f32 %v253, 1.442695
    %v260 = vpow.pop %v259
    %v261 = vmul.f32 %v254, 1.442695
    %v262 = vpow.pop %v261
    %v263 = vsel %vm234, %v256, 0.0
    %264 = vadd.xlane.f32.xlu0 %v263
    %v265 = vpop.xlane.xlu0 %264
    %v266 = vsel %vm234, %v258, 0.0
    %267 = vadd.xlane.f32.xlu0 %v266
    %v268 = vpop.xlane.xlu0 %267
    %v269 = vsel %vm234, %v260, 0.0
    %270 = vadd.xlane.f32.xlu0 %v269
    %v271 = vpop.xlane.xlu0 %270
    %v272 = vsel %vm234, %v262, 0.0
    %273 = vadd.xlane.f32.xlu0 %v272
    %v274 = vpop.xlane.xlu0 %273
    %v275 = vsub.f32 -142.85715, %v247
    %v276 = vsub.f32 -142.85715, %v248
    %v277 = vsub.f32 -142.85715, %v249
    %v278 = vsub.f32 -142.85715, %v250
    %v279 = vmul.f32 %v275, 1.442695
    %v280 = vpow.pop %v279
    %v281 = vmul.f32 %v276, 1.442695
    %v282 = vpow.pop %v281
    %v283 = vmul.f32 %v277, 1.442695
    %v284 = vpow.pop %v283
    %v285 = vmul.f32 %v278, 1.442695
    %v286 = vpow.pop %v285
    %v287 = vadd.f32 %v265, %v280
    %v288 = vadd.f32 %v268, %v282
    %v289 = vadd.f32 %v271, %v284
    %v290 = vadd.f32 %v274, %v286
    %v291 = vlog2.pop %v287
    %v292 = vmul.f32 %v291, 0.6931472
    %v293 = vlog2.pop %v288
    %v294 = vmul.f32 %v293, 0.6931472
    %v295 = vlog2.pop %v289
    %v296 = vmul.f32 %v295, 0.6931472
    %v297 = vlog2.pop %v290
    %v298 = vmul.f32 %v297, 0.6931472
    %v299 = vadd.f32 %v247, %v292
    %v300 = vadd.f32 %v248, %v294
    %v301 = vadd.f32 %v249, %v296
    %v302 = vadd.f32 %v250, %v298
    %v303 = vsub.f32 %v299, %v227
    %v304 = vsub.f32 %v300, %v229
    %v305 = vsub.f32 %v301, %v231
    %v306 = vsub.f32 %v302, %v233
    %307 = vxpose.xlu0.b32.start [1/16] %v303, 128
    %308 = vxpose.xlu0.b32.cont [2/16] %v304, 128
    %309 = vxpose.xlu0.b32.cont [3/16] 0.0, 128
    %310 = vxpose.xlu0.b32.cont [4/16] 0.0, 128
    %311 = vxpose.xlu0.b32.cont [5/16] 0.0, 128
    %312 = vxpose.xlu0.b32.cont [6/16] 0.0, 128
    %313 = vxpose.xlu0.b32.cont [7/16] 0.0, 128
    %314 = vxpose.xlu0.b32.cont [8/16] 0.0, 128
    %315 = vxpose.xlu0.b32.cont [9/16] 0.0, 128
    %316 = vxpose.xlu0.b32.cont [10/16] 0.0, 128
    %317 = vxpose.xlu0.b32.cont [11/16] 0.0, 128
    %318 = vxpose.xlu0.b32.cont [12/16] 0.0, 128
    %319 = vxpose.xlu0.b32.cont [13/16] 0.0, 128
    %320 = vxpose.xlu0.b32.cont [14/16] 0.0, 128
    %321 = vxpose.xlu0.b32.cont [15/16] 0.0, 128
    %322 = vxpose.xlu0.b32.end [16/16] 0.0, 128
    %v323 = vpop.trf.xlu0
    %v324 = vpop.trf.xlu0
    %v325 = vpop.trf.xlu0
    %v326 = vpop.trf.xlu0
    %v327 = vpop.trf.xlu0
    %v328 = vpop.trf.xlu0
    %v329 = vpop.trf.xlu0
    %v330 = vpop.trf.xlu0
    %v331 = vpop.trf.xlu0
    %v332 = vpop.trf.xlu0
    %v333 = vpop.trf.xlu0
    %v334 = vpop.trf.xlu0
    %v335 = vpop.trf.xlu0
    %v336 = vpop.trf.xlu0
    %v337 = vpop.trf.xlu0
    %v338 = vpop.trf.xlu0
    %vm339 = vcmask 122880
    %340 = vst.msk [vmem:[#allocation8] sm:$0x1] %vm339, %v323
    %341 = vxpose.xlu0.b32.start [1/16] %v305, 128
    %342 = vxpose.xlu0.b32.cont [2/16] %v306, 128
    %343 = vxpose.xlu0.b32.cont [3/16] 0.0, 128
    %344 = vxpose.xlu0.b32.cont [4/16] 0.0, 128
    %345 = vxpose.xlu0.b32.cont [5/16] 0.0, 128
    %346 = vxpose.xlu0.b32.cont [6/16] 0.0, 128
    %347 = vxpose.xlu0.b32.cont [7/16] 0.0, 128
    %348 = vxpose.xlu0.b32.cont [8/16] 0.0, 128
    %349 = vxpose.xlu0.b32.cont [9/16] 0.0, 128
    %350 = vxpose.xlu0.b32.cont [10/16] 0.0, 128
    %351 = vxpose.xlu0.b32.cont [11/16] 0.0, 128
    %352 = vxpose.xlu0.b32.cont [12/16] 0.0, 128
    %353 = vxpose.xlu0.b32.cont [13/16] 0.0, 128
    %354 = vxpose.xlu0.b32.cont [14/16] 0.0, 128
    %355 = vxpose.xlu0.b32.cont [15/16] 0.0, 128
    %356 = vxpose.xlu0.b32.end [16/16] 0.0, 128
    %v357 = vpop.trf.xlu0
    %v358 = vpop.trf.xlu0
    %v359 = vpop.trf.xlu0
    %v360 = vpop.trf.xlu0
    %v361 = vpop.trf.xlu0
    %v362 = vpop.trf.xlu0
    %v363 = vpop.trf.xlu0
    %v364 = vpop.trf.xlu0
    %v365 = vpop.trf.xlu0
    %v366 = vpop.trf.xlu0
    %v367 = vpop.trf.xlu0
    %v368 = vpop.trf.xlu0
    %v369 = vpop.trf.xlu0
    %v370 = vpop.trf.xlu0
    %v371 = vpop.trf.xlu0
    %v372 = vpop.trf.xlu0
    %s373 = scalar_lea.vmem [#allocation8], 1
    %374 = vst.msk [vmem:[%s373] sm:$0x1] %vm339, %v357
    // Predicated region
    $region26: #{tpu_custom_call.1} parent=1 // pred_check
      _
    $region27: #{tpu_custom_call.1} parent=1 // pred_check_branch
      %376 = sbr.rel (0) target = $region29
    $region28: #{tpu_custom_call.1} parent=1 // pred_region
      %s378 = ssub.s32 32, 32
      %379 = vsyncadd [#allocation4], %s378
      %s380 = sshll.u32 [#allocation8], 4
      %s381 = int_to_ptr.vmem [resolvable:$true] %s380
      %386 = dma.vmem_to_hbm [thread:$0]  %s381, 32, %s3, [#allocation4], 16, 16, 1
    $region29: #{tpu_custom_call.1} parent=1 // pred_fallthru
      _
    // Predicated region
    $region30: #{tpu_custom_call.1} parent=1 // pred_check
      _
    $region31: #{tpu_custom_call.1} parent=1 // pred_check_branch
      %388 = sbr.rel (0) target = $region33
    $region32: #{tpu_custom_call.1} parent=1 // pred_region
      %389 = dma.done [#allocation4], 32
    $region33: #{tpu_custom_call.1} parent=1 // pred_fallthru
      _
    %390 = vsyncpa [#allocation3], 1
    %391 = vsyncpa [#allocation6], 1
    %392 = vsyncpa [#allocation4], 1

</llo_original>
